<compile_context>
chip_gen: v5e
topology: v5e:2x2
jax: 0.10.0
libtpu: 0.0.40
codegen_flags: <defaults>
</compile_context>

<pallas_src>
import functools
import math

import jax
import jax.numpy as jnp
from jax import lax
from jax.experimental import pallas as pl
from jax.experimental.pallas import tpu as pltpu


# --------------------------- kernel A: projection (one-time prep) ---------------------------
def _gat_proj_kernel(x_ref, w_ref, w_res_ref, a_srcT_ref, a_dst_ref,
                     h_ref, ssrcT_ref, sdst_ref, res_ref):
    """h = x @ W (bf16 operands, f32 acc; stored bf16 for kernel B),
    s_dst = h @ A_dst [TILE, K], s_src^T = A_src^T contracted with h -> [K, TILE]
    (nodes on lanes so kernel B never transposes), res = x @ W_res [TILE, KD]."""
    x = x_ref[...]                                                   # bf16 [T, Fp]
    h = jnp.dot(x, w_ref[...], preferred_element_type=jnp.float32)  # f32  [T, KD]
    h_ref[...] = h.astype(jnp.bfloat16)
    sdst_ref[...] = jnp.dot(h, a_dst_ref[...], preferred_element_type=jnp.float32)
    ssrcT_ref[...] = lax.dot_general(
        a_srcT_ref[...], h, (((1,), (1,)), ((), ())),
        preferred_element_type=jnp.float32)
    res_ref[...] = jnp.dot(x, w_res_ref[...], preferred_element_type=jnp.float32)


# -------- kernel B: dst-tile x src-tile online-softmax attention + aggregation + LN + ELU --------
def _gat_attn_kernel(num_heads, out_dim,
                     adj_ref, h_ref, ssrcT_ref, sdst_ref, res_ref,
                     gamma_ref, beta_ref,
                     out_ref, m_sc, l_sc, acc_sc):
    j = pl.program_id(1)                              # src-tile index (reduction axis)

    @pl.when(j == 0)
    def _():
        m_sc[...] = jnp.full_like(m_sc, -1e30)
        l_sc[...] = jnp.zeros_like(l_sc)
        acc_sc[...] = jnp.zeros_like(acc_sc)

    adj_mask = adj_ref[...] > 0                       # [Td, Ts] bool (int8 input)
    sdst = sdst_ref[...]                              # [Td, K] f32
    ssrcT = ssrcT_ref[...]                            # [K, Ts] f32
    m_old = m_sc[...]                                 # [Td, K]
    l_old = l_sc[...]                                 # [Td, K]

    m_cols, l_cols, scale_cols, part_cols = [], [], [], []
    for k in range(num_heads):                        # num_heads small & static (unrolled)
        sc = sdst[:, k:k + 1] + ssrcT[k:k + 1, :]     # [Td, Ts]
        sc = jnp.maximum(sc, 0.2 * sc)                # leaky_relu(0.2), single VPU op
        sc = jnp.where(adj_mask, sc, -1e30)           # true masked scores (finite fill)
        m_cur = jnp.max(sc, axis=-1, keepdims=True)   # [Td, 1]
        m_new = jnp.maximum(m_old[:, k:k + 1], m_cur)
        # sc <= m_new everywhere -> exp argument <= 0, never overflows; non-edges
        # underflow to 0 and are forced to exactly 0 (handles edge-less rows too).
        p = jnp.where(adj_mask, jnp.exp(sc - m_new), 0.0)
        a = jnp.exp(m_old[:, k:k + 1] - m_new)        # online-softmax rescale factor
        # TODO(synk): denominator could ride the MXU (append ones column to h_k).
        l_cols.append(a * l_old[:, k:k + 1] + jnp.sum(p, axis=-1, keepdims=True))
        m_cols.append(m_new)
        scale_cols.append(jnp.broadcast_to(a, (a.shape[0], out_dim)))
        h_k = h_ref[:, k * out_dim:(k + 1) * out_dim]                # bf16 [Ts, D]
        part_cols.append(jnp.dot(p.astype(jnp.bfloat16), h_k,
                                 preferred_element_type=jnp.float32))

    # lane-dense full-width stores (no narrow masked column writes)
    m_sc[...] = jnp.concatenate(m_cols, axis=-1)
    l_sc[...] = jnp.concatenate(l_cols, axis=-1)
    acc_sc[...] = (jnp.concatenate(scale_cols, axis=-1) * acc_sc[...]
                   + jnp.concatenate(part_cols, axis=-1))

    @pl.when(j == pl.num_programs(1) - 1)
    def _():
        l = l_sc[...]                                                 # [Td, K]
        inv_l = pl.reciprocal(jnp.maximum(l, 1e-16), approx=True)     # EUP
        inv_full = jnp.concatenate(
            [jnp.broadcast_to(inv_l[:, k:k + 1], (inv_l.shape[0], out_dim))
             for k in range(num_heads)], axis=-1)                     # [Td, KD]
        y = acc_sc[...] * inv_full + res_ref[...]                     # softmax-normalize + residual
        mu = jnp.mean(y, axis=-1, keepdims=True)
        var = jnp.mean((y - mu) ** 2, axis=-1, keepdims=True)
        y = (y - mu) * lax.rsqrt(var + 1e-5)
        y = y * gamma_ref[...] + beta_ref[...]                        # LayerNorm affine
        out_ref[...] = jnp.where(y > 0, y, jnp.exp(jnp.minimum(y, 0.0)) - 1.0
                                 ).astype(out_ref.dtype)              # ELU


# ------------------------------------- wrapper -------------------------------------
def _round_up(v, m):
    return ((v + m - 1) // m) * m


_TILE_SRC = 512   # src (reduction) tile; lane-aligned, bounds VMEM at O(tile^2)
_TILE_DST = 512   # dst (parallel) tile


def _choose_tiles(N):
    n_pad = _round_up(max(N, 8), 128)                 # lane-aligned node axis
    if n_pad > _TILE_SRC:
        n_pad = _round_up(n_pad, _TILE_SRC)
        tile_src = _TILE_SRC
    else:
        tile_src = n_pad
    if n_pad >= 2 * _TILE_DST:
        tile_dst = _TILE_DST
    else:
        tile_dst = max(8, n_pad // 2)                 # >=2 dst tiles -> both v7x cores busy
    return n_pad, tile_dst, tile_src


def multi_head_gat_forward(x, edge_index, params, *, num_heads, out_dim_per_head):
    """x: [N, in_dim] f32; edge_index: [2, E] int32 (row 0 = src, row 1 = dst).
    Implements concat=True; residual variant is encoded in params['w_res']."""
    N, f_in = x.shape
    if N == 0:                                        # PyTorch N==0 path: return x
        return x
    K, D = num_heads, out_dim_per_head
    KD = K * D
    # TODO(synk): concat=False (mean over heads) variant not implemented.

    n_pad, tile_dst, tile_src = _choose_tiles(N)
    n_dst_tiles = n_pad // tile_dst
    n_src_tiles = n_pad // tile_src
    f_pad = _round_up(max(f_in, 128), 128)            # lane-dense x loads / full MXU pass

    # ---- glue: padding / dense adjacency / per-head block attention matrices ----
    x_pad = jnp.zeros((n_pad, f_pad), jnp.bfloat16).at[:N, :f_in].set(
        x.astype(jnp.bfloat16))
    src, dst = edge_index[0], edge_index[1]
    adj = jnp.zeros((n_pad, n_pad), jnp.int8).at[dst, src].set(1)   # adj[dst, src]
    # TODO(synk): duplicate edges in edge_index collapse to a single edge in the dense mask.
    # TODO(synk): v5e could bit-pack adj to 1 bit/edge (8x less O(N^2) DMA).

    a_vec = params["attn_w"][0].astype(jnp.float32)     # [2D]: cat([h_src, h_dst]) weights
    a_src, a_dst = a_vec[:D], a_vec[D:]
    a_srcT_mat = jnp.kron(jnp.eye(K, dtype=jnp.float32), a_src[None, :])   # [K, KD]
    a_dst_mat = jnp.kron(jnp.eye(K, dtype=jnp.float32), a_dst[:, None])    # [KD, K]

    w_t = jnp.zeros((f_pad, KD), jnp.bfloat16).at[:f_in].set(
        params["w_t"].astype(jnp.bfloat16))
    w_res = jnp.zeros((f_pad, KD), jnp.bfloat16).at[:f_in].set(
        params["w_res"].astype(jnp.bfloat16))
    gamma = params["gamma"].reshape(1, KD).astype(jnp.float32)
    beta = params["beta"].reshape(1, KD).astype(jnp.float32)

    # ---- kernel A: projection + hoisted attention-score halves + residual projection ----
    h, ssrcT, sdst, res = pl.pallas_call(
        _gat_proj_kernel,
        out_shape=(jax.ShapeDtypeStruct((n_pad, KD), jnp.bfloat16),
                   jax.ShapeDtypeStruct((K, n_pad), jnp.float32),
                   jax.ShapeDtypeStruct((n_pad, K), jnp.float32),
                   jax.ShapeDtypeStruct((n_pad, KD), jnp.float32)),
        grid_spec=pltpu.PrefetchScalarGridSpec(
            num_scalar_prefetch=0,
            grid=(n_src_tiles,),
            in_specs=[pl.BlockSpec((tile_src, f_pad), lambda i: (i, 0)),
                      pl.BlockSpec((f_pad, KD), lambda i: (0, 0)),
                      pl.BlockSpec((f_pad, KD), lambda i: (0, 0)),
                      pl.BlockSpec((K, KD), lambda i: (0, 0)),
                      pl.BlockSpec((KD, K), lambda i: (0, 0))],
            out_specs=[pl.BlockSpec((tile_src, KD), lambda i: (i, 0)),
                       pl.BlockSpec((K, tile_src), lambda i: (0, i)),
                       pl.BlockSpec((tile_src, K), lambda i: (i, 0)),
                       pl.BlockSpec((tile_src, KD), lambda i: (i, 0))]),
        compiler_params=pltpu.CompilerParams(dimension_semantics=("parallel",)),
    )(x_pad, w_t, w_res, a_srcT_mat, a_dst_mat)

    # ---- kernel B: dst-tile x src-tile online softmax, aggregation, residual, LN, ELU ----
    out_pad = pl.pallas_call(
        functools.partial(_gat_attn_kernel, K, D),
        out_shape=jax.ShapeDtypeStruct((n_pad, KD), jnp.float32),
        grid_spec=pltpu.PrefetchScalarGridSpec(
            num_scalar_prefetch=0,
            grid=(n_dst_tiles, n_src_tiles),
            in_specs=[pl.BlockSpec((tile_dst, tile_src), lambda i, j: (i, j)),  # adj int8
                      pl.BlockSpec((tile_src, KD), lambda i, j: (j, 0)),        # h (bf16)
                      pl.BlockSpec((K, tile_src), lambda i, j: (0, j)),         # s_src^T
                      pl.BlockSpec((tile_dst, K), lambda i, j: (i, 0)),         # s_dst
                      pl.BlockSpec((tile_dst, KD), lambda i, j: (i, 0)),        # res
                      pl.BlockSpec((1, KD), lambda i, j: (0, 0)),               # LN gamma
                      pl.BlockSpec((1, KD), lambda i, j: (0, 0))],              # LN beta
            out_specs=pl.BlockSpec((tile_dst, KD), lambda i, j: (i, 0)),
            scratch_shapes=[pltpu.VMEM((tile_dst, K), jnp.float32),   # m (online max)
                            pltpu.VMEM((tile_dst, K), jnp.float32),   # l (denominator)
                            pltpu.VMEM((tile_dst, KD), jnp.float32)]),  # acc
        compiler_params=pltpu.CompilerParams(
            dimension_semantics=("parallel", "arbitrary")),  # dst parallel, src reduction
    )(adj, h, ssrcT, sdst, res, gamma, beta)

    return out_pad[:N]


# ------------------------- parameter init (mirrors the PyTorch module) -------------------------
def _xavier_uniform(key, out_dim, in_dim, gain):
    limit = gain * math.sqrt(6.0 / (in_dim + out_dim))
    return jax.random.uniform(key, (out_dim, in_dim), jnp.float32, -limit, limit)


def make_params(key, in_dim, out_dim_per_head, num_heads, residual=True):
    K, D = num_heads, out_dim_per_head
    KD = K * D
    kw, ka, kr = jax.random.split(key, 3)
    g_relu = math.sqrt(2.0)
    g_leaky = math.sqrt(2.0 / (1.0 + 0.2 ** 2))
    w = _xavier_uniform(kw, KD, in_dim, g_relu)          # W.weight         (KD, in)
    attn_w = _xavier_uniform(ka, 1, 2 * D, g_leaky)      # attn_mlp.weight  (1, 2D)
    if residual:
        if in_dim != KD:
            w_res = _xavier_uniform(kr, KD, in_dim, g_relu).T   # res_fc Linear -> (in, KD)
        else:
            w_res = jnp.eye(KD, dtype=jnp.float32)              # res_fc = Identity
    else:
        w_res = jnp.zeros((in_dim, KD), jnp.float32)            # no residual
    return dict(w_t=w.T, attn_w=attn_w, w_res=w_res,
                gamma=jnp.ones((1, KD), jnp.float32),
                beta=jnp.zeros((1, KD), jnp.float32))


# ------------------------- pure-JAX reference (module semantics, f32) -------------------------
def reference_forward(x, edge_index, p, *, num_heads, out_dim_per_head):
    N = x.shape[0]
    K, D = num_heads, out_dim_per_head
    h = x @ p["w_t"]
    hh = h.reshape(N, K, D)
    a_vec = p["attn_w"][0]
    s_src = hh @ a_vec[:D]                               # [N, K]
    s_dst = hh @ a_vec[D:]                               # [N, K]
    src, dst = edge_index[0], edge_index[1]
    adj = jnp.zeros((N, N), jnp.float32).at[dst, src].set(1.0)
    outs = []
    for k in range(K):
        sc = s_dst[:, k][:, None] + s_src[:, k][None, :]
        sc = jnp.where(sc > 0, sc, 0.2 * sc)
        masked = jnp.where(adj > 0, sc, -1e30)
        e = jnp.exp(masked - masked.max(-1, keepdims=True)) * adj
        alpha = e / jnp.maximum(e.sum(-1, keepdims=True), 1e-16)
        outs.append(alpha @ hh[:, k, :])
    y = jnp.concatenate(outs, axis=-1) + x @ p["w_res"]
    mu = y.mean(-1, keepdims=True)
    var = ((y - mu) ** 2).mean(-1, keepdims=True)
    y = (y - mu) / jnp.sqrt(var + 1e-5) * p["gamma"] + p["beta"]
    return jnp.where(y > 0, y, jnp.exp(jnp.minimum(y, 0.0)) - 1.0)


def _run_case(key, N, in_dim, out_dim, num_heads, edge_p):
    k_param, k_x, k_adj = jax.random.split(key, 3)
    params = make_params(k_param, in_dim, out_dim, num_heads, residual=True)
    x = jax.random.normal(k_x, (N, in_dim), jnp.float32)
    # random directed graph with self-loops, presented as an edge list (module interface)
    dense = jax.random.bernoulli(k_adj, edge_p, (N, N)) | jnp.eye(N, dtype=bool)
    dst_idx, src_idx = jnp.nonzero(dense)                # dense[dst, src]
    edge_index = jnp.stack([src_idx, dst_idx]).astype(jnp.int32)

    out = jax.block_until_ready(
        multi_head_gat_forward(x, edge_index, params,
                               num_heads=num_heads, out_dim_per_head=out_dim))
    ref = jax.block_until_ready(
        reference_forward(x, edge_index, params,
                          num_heads=num_heads, out_dim_per_head=out_dim))
    assert out.shape == (N, num_heads * out_dim)
    err = float(jnp.max(jnp.abs(out - ref)))
    # bf16 MXU operands on the hot path -> relaxed tolerance vs the pure-f32 reference
    assert jnp.allclose(out, ref, atol=4e-2, rtol=4e-2), f"N={N} max abs err {err}"
    return err


if __name__ == "__main__":
    IN_DIM, OUT_DIM, NUM_HEADS = 24, 16, 4               # concat=True -> 64 features out
    key = jax.random.PRNGKey(0)
    k1, k2 = jax.random.split(key)

    _run_case(k1, N=16, in_dim=IN_DIM, out_dim=OUT_DIM, num_heads=NUM_HEADS, edge_p=0.3)
    # larger case exercises multiple src tiles -> the online-softmax path across grid steps
    _run_case(k2, N=600, in_dim=IN_DIM, out_dim=OUT_DIM, num_heads=NUM_HEADS, edge_p=0.02)

    print("KERNEL_OK")
</pallas_src>

<mosaic_0001>
module attributes {stable_mosaic.version = 11 : i64} {
  func.func @_gat_proj_kernel(%arg0: i32, %arg1: memref<128x128xbf16, #tpu.memory_space<vmem>>, %arg2: memref<128x64xbf16, #tpu.memory_space<vmem>>, %arg3: memref<128x64xbf16, #tpu.memory_space<vmem>>, %arg4: memref<4x64xf32, #tpu.memory_space<vmem>>, %arg5: memref<64x4xf32, #tpu.memory_space<vmem>>, %arg6: memref<128x64xbf16, #tpu.memory_space<vmem>>, %arg7: memref<4x128xf32, #tpu.memory_space<vmem>>, %arg8: memref<128x4xf32, #tpu.memory_space<vmem>>, %arg9: memref<128x64xf32, #tpu.memory_space<vmem>>) attributes {dimension_semantics = [#tpu.dimension_semantics<parallel>], iteration_bounds = array<i64: 1>, scalar_prefetch = 0 : i64, scratch_operands = 0 : i64, tpu.core_type = #tpu.core_type<tc>, window_params = [{transform_indices = @transform_0, window_bounds = array<i64: 128, 128>}, {pipeline_mode = #tpu.pipeline_mode<synchronous>, transform_indices = @transform_1, window_bounds = array<i64: 128, 64>}, {pipeline_mode = #tpu.pipeline_mode<synchronous>, transform_indices = @transform_2, window_bounds = array<i64: 128, 64>}, {pipeline_mode = #tpu.pipeline_mode<synchronous>, transform_indices = @transform_3, window_bounds = array<i64: 4, 64>}, {pipeline_mode = #tpu.pipeline_mode<synchronous>, transform_indices = @transform_4, window_bounds = array<i64: 64, 4>}, {transform_indices = @transform_5, window_bounds = array<i64: 128, 64>}, {transform_indices = @transform_6, window_bounds = array<i64: 4, 128>}, {transform_indices = @transform_7, window_bounds = array<i64: 128, 4>}, {transform_indices = @transform_8, window_bounds = array<i64: 128, 64>}]} {
    %c0 = arith.constant 0 : index
    %c0_0 = arith.constant 0 : index
    %0 = vector.load %arg1[%c0, %c0_0] : memref<128x128xbf16, #tpu.memory_space<vmem>>, vector<128x128xbf16>
    %c0_1 = arith.constant 0 : index
    %c0_2 = arith.constant 0 : index
    %1 = vector.load %arg2[%c0_1, %c0_2] : memref<128x64xbf16, #tpu.memory_space<vmem>>, vector<128x64xbf16>
    %cst = arith.constant dense<0.000000e+00> : vector<128x64xf32>
    %2 = tpu.matmul %0, %1, %cst {dimension_numbers = #tpu.dot_dimension_numbers<[1], [0], [0], [1], [0, 0, 1, 1], [], []>} : vector<128x128xbf16>, vector<128x64xbf16>, vector<128x64xf32> -> vector<128x64xf32>
    %3 = arith.truncf %2 : vector<128x64xf32> to vector<128x64xbf16>
    %c0_3 = arith.constant 0 : index
    %c0_4 = arith.constant 0 : index
    %4 = vector.load %arg6[%c0_3, %c0_4] : memref<128x64xbf16, #tpu.memory_space<vmem>>, vector<128x64xbf16>
    tpu.vector_store %arg6[%c0_3, %c0_4], %3 {strides = array<i32>} : memref<128x64xbf16, #tpu.memory_space<vmem>>, vector<128x64xbf16>,
    %c0_5 = arith.constant 0 : index
    %c0_6 = arith.constant 0 : index
    %5 = vector.load %arg5[%c0_5, %c0_6] : memref<64x4xf32, #tpu.memory_space<vmem>>, vector<64x4xf32>
    %cst_7 = arith.constant dense<0.000000e+00> : vector<128x4xf32>
    %6 = tpu.matmul %2, %5, %cst_7 {dimension_numbers = #tpu.dot_dimension_numbers<[1], [0], [0], [1], [0, 0, 1, 1], [], []>} : vector<128x64xf32>, vector<64x4xf32>, vector<128x4xf32> -> vector<128x4xf32>
    %c0_8 = arith.constant 0 : index
    %c0_9 = arith.constant 0 : index
    %7 = vector.load %arg8[%c0_8, %c0_9] : memref<128x4xf32, #tpu.memory_space<vmem>>, vector<128x4xf32>
    tpu.vector_store %arg8[%c0_8, %c0_9], %6 {strides = array<i32>} : memref<128x4xf32, #tpu.memory_space<vmem>>, vector<128x4xf32>,
    %c0_10 = arith.constant 0 : index
    %c0_11 = arith.constant 0 : index
    %8 = vector.load %arg4[%c0_10, %c0_11] : memref<4x64xf32, #tpu.memory_space<vmem>>, vector<4x64xf32>
    %cst_12 = arith.constant dense<0.000000e+00> : vector<4x128xf32>
    %9 = tpu.matmul %8, %2, %cst_12 {dimension_numbers = #tpu.dot_dimension_numbers<[1], [1], [0], [0], [0, 0, 1, 0], [], []>} : vector<4x64xf32>, vector<128x64xf32>, vector<4x128xf32> -> vector<4x128xf32>
    %c0_13 = arith.constant 0 : index
    %c0_14 = arith.constant 0 : index
    %10 = vector.load %arg7[%c0_13, %c0_14] : memref<4x128xf32, #tpu.memory_space<vmem>>, vector<4x128xf32>
    tpu.vector_store %arg7[%c0_13, %c0_14], %9 {strides = array<i32>} : memref<4x128xf32, #tpu.memory_space<vmem>>, vector<4x128xf32>,
    %c0_15 = arith.constant 0 : index
    %c0_16 = arith.constant 0 : index
    %11 = vector.load %arg3[%c0_15, %c0_16] : memref<128x64xbf16, #tpu.memory_space<vmem>>, vector<128x64xbf16>
    %cst_17 = arith.constant dense<0.000000e+00> : vector<128x64xf32>
    %12 = tpu.matmul %0, %11, %cst_17 {dimension_numbers = #tpu.dot_dimension_numbers<[1], [0], [0], [1], [0, 0, 1, 1], [], []>} : vector<128x128xbf16>, vector<128x64xbf16>, vector<128x64xf32> -> vector<128x64xf32>
    %c0_18 = arith.constant 0 : index
    %c0_19 = arith.constant 0 : index
    %13 = vector.load %arg9[%c0_18, %c0_19] : memref<128x64xf32, #tpu.memory_space<vmem>>, vector<128x64xf32>
    tpu.vector_store %arg9[%c0_18, %c0_19], %12 {strides = array<i32>} : memref<128x64xf32, #tpu.memory_space<vmem>>, vector<128x64xf32>,
    return
  }
  func.func @transform_0(%arg0: i32) -> (i32, i32) {
    %c0_i32 = arith.constant 0 : i32
    %c0_i32_0 = arith.constant 0 : i32
    return %arg0, %c0_i32 : i32, i32
  }
  func.func @transform_1(%arg0: i32) -> (i32, i32) {
    %c0_i32 = arith.constant 0 : i32
    %c0_i32_0 = arith.constant 0 : i32
    %c0_i32_1 = arith.constant 0 : i32
    return %c0_i32, %c0_i32_0 : i32, i32
  }
  func.func @transform_2(%arg0: i32) -> (i32, i32) {
    %c0_i32 = arith.constant 0 : i32
    %c0_i32_0 = arith.constant 0 : i32
    %c0_i32_1 = arith.constant 0 : i32
    return %c0_i32, %c0_i32_0 : i32, i32
  }
  func.func @transform_3(%arg0: i32) -> (i32, i32) {
    %c0_i32 = arith.constant 0 : i32
    %c0_i32_0 = arith.constant 0 : i32
    %c0_i32_1 = arith.constant 0 : i32
    return %c0_i32, %c0_i32_0 : i32, i32
  }
  func.func @transform_4(%arg0: i32) -> (i32, i32) {
    %c0_i32 = arith.constant 0 : i32
    %c0_i32_0 = arith.constant 0 : i32
    %c0_i32_1 = arith.constant 0 : i32
    return %c0_i32, %c0_i32_0 : i32, i32
  }
  func.func @transform_5(%arg0: i32) -> (i32, i32) {
    %c0_i32 = arith.constant 0 : i32
    %c0_i32_0 = arith.constant 0 : i32
    return %arg0, %c0_i32 : i32, i32
  }
  func.func @transform_6(%arg0: i32) -> (i32, i32) {
    %c0_i32 = arith.constant 0 : i32
    %c0_i32_0 = arith.constant 0 : i32
    return %c0_i32, %arg0 : i32, i32
  }
  func.func @transform_7(%arg0: i32) -> (i32, i32) {
    %c0_i32 = arith.constant 0 : i32
    %c0_i32_0 = arith.constant 0 : i32
    return %arg0, %c0_i32 : i32, i32
  }
  func.func @transform_8(%arg0: i32) -> (i32, i32) {
    %c0_i32 = arith.constant 0 : i32
    %c0_i32_0 = arith.constant 0 : i32
    return %arg0, %c0_i32 : i32, i32
  }
}

</mosaic_0001>

<llo_original>
// kernel: tpu_custom_call.1
$region0: #{tpu_custom_call.1}
  #allocation0 [shape = 'u32[]', space=smem, size = 0x4, offset = 0x4, fixed_abs, tag = 'smem constant byte address 0x4 - core index']
  #allocation1 [shape = 'u32[72,128]{1,0:T(1,128)}', space=vmem, size = 0x9000, scoped, tag = 'internal scratch']
  %s0 = inlined_call_operand.vmem [shape: bf16[128,128], index: 0, kind: input, shape index: {}]
  %s1 = inlined_call_operand.vmem [shape: bf16[128,64], index: 1, kind: input, shape index: {}]
  %s2 = inlined_call_operand.vmem [shape: bf16[128,64], index: 2, kind: input, shape index: {}]
  %s3 = inlined_call_operand.vmem [shape: f32[4,64], index: 3, kind: input, shape index: {}]
  %s4 = inlined_call_operand.vmem [shape: f32[64,4], index: 4, kind: input, shape index: {}]
  %s5 = inlined_call_operand.vmem [shape: bf16[128,64], index: 5, kind: output, shape index: {0}]
  %s6 = inlined_call_operand.hbm [shape: f32[4,128], index: 6, kind: output, shape index: {1}]
  %s7 = inlined_call_operand.vmem [shape: f32[128,4], index: 7, kind: output, shape index: {2}]
  %s8 = inlined_call_operand.vmem [shape: f32[128,64], index: 8, kind: output, shape index: {3}]
  %9 = xla_tuple %s5, %s6, %s7, %s8
  %s10 = sld [smem:[#allocation0]]
  $region54: #{tpu_custom_call.1} parent=0
    _
  %s12 = ssub.s32 1, %s10
  %s13 = scalar_select 0, %s12, %s10
  $region1: #{tpu_custom_call.1} parent=0
    #allocation2 [shape = 'u8[2048]{0}', space=vmem, size = 0x800, scoped, tag = 'output window, operand 1, single buffered']
    #allocation3 [shape = 's32[1]{0}', space=sflag, size = 0x4, scoped, tag = 'scoped memory for tpu_custom_call.1']
    %14 = vsyncpa [#allocation3], 0
    // Predicated region
    $region2: #{tpu_custom_call.1} parent=1 // pred_check
      _
    $region3: #{tpu_custom_call.1} parent=1 // pred_check_branch
      %16 = sbr.rel (0) target = $region5
    $region4: #{tpu_custom_call.1} parent=1 // pred_region
      _
    $region5: #{tpu_custom_call.1} parent=1 // pred_fallthru
      _
    // Predicated region
    $region6: #{tpu_custom_call.1} parent=1 // pred_check
      _
    $region7: #{tpu_custom_call.1} parent=1 // pred_check_branch
      %18 = sbr.rel (0) target = $region9
    $region8: #{tpu_custom_call.1} parent=1 // pred_region
      _
    $region9: #{tpu_custom_call.1} parent=1 // pred_fallthru
      _
    // Predicated region
    $region10: #{tpu_custom_call.1} parent=1 // pred_check
      _
    $region11: #{tpu_custom_call.1} parent=1 // pred_check_branch
      %20 = sbr.rel (0) target = $region13
    $region12: #{tpu_custom_call.1} parent=1 // pred_region
      _
    $region13: #{tpu_custom_call.1} parent=1 // pred_fallthru
      _
    // Predicated region
    $region14: #{tpu_custom_call.1} parent=1 // pred_check
      _
    $region15: #{tpu_custom_call.1} parent=1 // pred_check_branch
      %22 = sbr.rel (0) target = $region17
    $region16: #{tpu_custom_call.1} parent=1 // pred_region
      _
    $region17: #{tpu_custom_call.1} parent=1 // pred_fallthru
      _
    // Predicated region
    $region18: #{tpu_custom_call.1} parent=1 // pred_check
      _
    $region19: #{tpu_custom_call.1} parent=1 // pred_check_branch
      %24 = sbr.rel (0) target = $region21
    $region20: #{tpu_custom_call.1} parent=1 // pred_region
      _
    $region21: #{tpu_custom_call.1} parent=1 // pred_fallthru
      _
    %v25 = vld [vmem:[%s0] sm:$0xf]
    %v26 = vld [vmem:[%s0 + $0x4] sm:$0xf]
    %v27 = vld [vmem:[%s0 + $0x8] sm:$0xf]
    %v28 = vld [vmem:[%s0 + $0xc] sm:$0xf]
    %v29 = vld [vmem:[%s0 + $0x10] sm:$0xf]
    %v30 = vld [vmem:[%s0 + $0x14] sm:$0xf]
    %v31 = vld [vmem:[%s0 + $0x18] sm:$0xf]
    %v32 = vld [vmem:[%s0 + $0x1c] sm:$0xf]
    %v33 = vld [vmem:[%s0 + $0x20] sm:$0xf]
    %v34 = vld [vmem:[%s0 + $0x24] sm:$0xf]
    %v35 = vld [vmem:[%s0 + $0x28] sm:$0xf]
    %v36 = vld [vmem:[%s0 + $0x2c] sm:$0xf]
    %v37 = vld [vmem:[%s0 + $0x30] sm:$0xf]
    %v38 = vld [vmem:[%s0 + $0x34] sm:$0xf]
    %v39 = vld [vmem:[%s0 + $0x38] sm:$0xf]
    %v40 = vld [vmem:[%s0 + $0x3c] sm:$0xf]
    %v41 = vld [vmem:[%s1] sm:$0xf]
    %v42 = vld [vmem:[%s1 + $0x4] sm:$0xf]
    %v43 = vld [vmem:[%s1 + $0x8] sm:$0xf]
    %v44 = vld [vmem:[%s1 + $0xc] sm:$0xf]
    %v45 = vld [vmem:[%s1 + $0x10] sm:$0xf]
    %v46 = vld [vmem:[%s1 + $0x14] sm:$0xf]
    %v47 = vld [vmem:[%s1 + $0x18] sm:$0xf]
    %v48 = vld [vmem:[%s1 + $0x1c] sm:$0xf]
    %v49 = vld [vmem:[%s1 + $0x20] sm:$0xf]
    %v50 = vld [vmem:[%s1 + $0x24] sm:$0xf]
    %v51 = vld [vmem:[%s1 + $0x28] sm:$0xf]
    %v52 = vld [vmem:[%s1 + $0x2c] sm:$0xf]
    %v53 = vld [vmem:[%s1 + $0x30] sm:$0xf]
    %v54 = vld [vmem:[%s1 + $0x34] sm:$0xf]
    %v55 = vld [vmem:[%s1 + $0x38] sm:$0xf]
    %v56 = vld [vmem:[%s1 + $0x3c] sm:$0xf]
    %v73 = vunpack.c.l.b16 %v25
    %v74 = vunpack.c.l.b16 %v26
    %v75 = vunpack.c.l.b16 %v27
    %v76 = vunpack.c.l.b16 %v28
    %v77 = vunpack.c.l.b16 %v29
    %v78 = vunpack.c.l.b16 %v30
    %v79 = vunpack.c.l.b16 %v31
    %v80 = vunpack.c.l.b16 %v32
    %v81 = vunpack.c.l.b16 %v33
    %v82 = vunpack.c.l.b16 %v34
    %v83 = vunpack.c.l.b16 %v35
    %v84 = vunpack.c.l.b16 %v36
    %v85 = vunpack.c.l.b16 %v37
    %v86 = vunpack.c.l.b16 %v38
    %v87 = vunpack.c.l.b16 %v39
    %v88 = vunpack.c.l.b16 %v40
    %v89 = vpack.c.b16 %v74, %v73
    %v90 = vpack.c.b16 %v76, %v75
    %v91 = vpack.c.b16 %v78, %v77
    %v92 = vpack.c.b16 %v80, %v79
    %v93 = vpack.c.b16 %v82, %v81
    %v94 = vpack.c.b16 %v84, %v83
    %v95 = vpack.c.b16 %v86, %v85
    %v96 = vpack.c.b16 %v88, %v87
    %v121 = vunpack.c.l.b16 %v41
    %v122 = vunpack.c.l.b16 %v42
    %v123 = vunpack.c.l.b16 %v43
    %v124 = vunpack.c.l.b16 %v44
    %v125 = vunpack.c.l.b16 %v45
    %v126 = vunpack.c.l.b16 %v46
    %v127 = vunpack.c.l.b16 %v47
    %v128 = vunpack.c.l.b16 %v48
    %v129 = vunpack.c.l.b16 %v49
    %v130 = vunpack.c.l.b16 %v50
    %v131 = vunpack.c.l.b16 %v51
    %v132 = vunpack.c.l.b16 %v52
    %v133 = vunpack.c.l.b16 %v53
    %v134 = vunpack.c.l.b16 %v54
    %v135 = vunpack.c.l.b16 %v55
    %v136 = vunpack.c.l.b16 %v56
    %v137 = vpack.c.b16 %v122, %v121
    %v138 = vpack.c.b16 %v124, %v123
    %v139 = vpack.c.b16 %v126, %v125
    %v140 = vpack.c.b16 %v128, %v127
    %v141 = vpack.c.b16 %v130, %v129
    %v142 = vpack.c.b16 %v132, %v131
    %v143 = vpack.c.b16 %v134, %v133
    %v144 = vpack.c.b16 %v136, %v135
    %153 = vmatpush.bf16.msra.mxu0 %v144
    %154 = vmatpush.bf16.msra.mxu0 %v143
    %155 = vmatpush.bf16.msra.mxu0 %v142
    %156 = vmatpush.bf16.msra.mxu0 %v141
    %157 = vmatpush.bf16.msra.mxu0 %v140
    %158 = vmatpush.bf16.msra.mxu0 %v139
    %159 = vmatpush.bf16.msra.mxu0 %v138
    %160 = vmatpush.bf16.msra.mxu0 %v137
    %161 = vmatmul.bf16.gmra.mxu0 %v89
    %v162 = vpop.f32.mrf.mxu0
    %v163 = vadd.f32 0.0, %v162
    %v164 = vpop.f32.mrf.mxu0
    %v165 = vadd.f32 0.0, %v164
    %166 = vmatmul.bf16.gmra.mxu0 %v90
    %v167 = vpop.f32.mrf.mxu0
    %v168 = vadd.f32 0.0, %v167
    %v169 = vpop.f32.mrf.mxu0
    %v170 = vadd.f32 0.0, %v169
    %171 = vmatmul.bf16.gmra.mxu0 %v91
    %v172 = vpop.f32.mrf.mxu0
    %v173 = vadd.f32 0.0, %v172
    %v174 = vpop.f32.mrf.mxu0
    %v175 = vadd.f32 0.0, %v174
    %176 = vmatmul.bf16.gmra.mxu0 %v92
    %v177 = vpop.f32.mrf.mxu0
    %v178 = vadd.f32 0.0, %v177
    %v179 = vpop.f32.mrf.mxu0
    %v180 = vadd.f32 0.0, %v179
    %181 = vmatmul.bf16.gmra.mxu0 %v93
    %v182 = vpop.f32.mrf.mxu0
    %v183 = vadd.f32 0.0, %v182
    %v184 = vpop.f32.mrf.mxu0
    %v185 = vadd.f32 0.0, %v184
    %186 = vmatmul.bf16.gmra.mxu0 %v94
    %v187 = vpop.f32.mrf.mxu0
    %v188 = vadd.f32 0.0, %v187
    %v189 = vpop.f32.mrf.mxu0
    %v190 = vadd.f32 0.0, %v189
    %191 = vmatmul.bf16.gmra.mxu0 %v95
    %v192 = vpop.f32.mrf.mxu0
    %v193 = vadd.f32 0.0, %v192
    %v194 = vpop.f32.mrf.mxu0
    %v195 = vadd.f32 0.0, %v194
    %196 = vmatmul.bf16.gmra.mxu0 %v96
    %v197 = vpop.f32.mrf.mxu0
    %v198 = vadd.f32 0.0, %v197
    %v199 = vpop.f32.mrf.mxu0
    %v200 = vadd.f32 0.0, %v199
    %201 = vdwg.mxu0
    %v202 = vpack.c.bf16 %v163, %v163
    %v203 = vpack.c.bf16 %v165, %v165
    %v204 = vpack.c.bf16 %v168, %v168
    %v205 = vpack.c.bf16 %v170, %v170
    %v206 = vpack.c.bf16 %v173, %v173
    %v207 = vpack.c.bf16 %v175, %v175
    %v208 = vpack.c.bf16 %v178, %v178
    %v209 = vpack.c.bf16 %v180, %v180
    %v210 = vpack.c.bf16 %v183, %v183
    %v211 = vpack.c.bf16 %v185, %v185
    %v212 = vpack.c.bf16 %v188, %v188
    %v213 = vpack.c.bf16 %v190, %v190
    %v214 = vpack.c.bf16 %v193, %v193
    %v215 = vpack.c.bf16 %v195, %v195
    %v216 = vpack.c.bf16 %v198, %v198
    %v217 = vpack.c.bf16 %v200, %v200
    %vm218 = vcmask 519168
    %219 = vst.msk [vmem:[%s5] sm:$0xf] %vm218, %v202
    %220 = vst.msk [vmem:[%s5 + $0x4] sm:$0xf] %vm218, %v203
    %221 = vst.msk [vmem:[%s5 + $0x8] sm:$0xf] %vm218, %v204
    %222 = vst.msk [vmem:[%s5 + $0xc] sm:$0xf] %vm218, %v205
    %223 = vst.msk [vmem:[%s5 + $0x10] sm:$0xf] %vm218, %v206
    %224 = vst.msk [vmem:[%s5 + $0x14] sm:$0xf] %vm218, %v207
    %225 = vst.msk [vmem:[%s5 + $0x18] sm:$0xf] %vm218, %v208
    %226 = vst.msk [vmem:[%s5 + $0x1c] sm:$0xf] %vm218, %v209
    %227 = vst.msk [vmem:[%s5 + $0x20] sm:$0xf] %vm218, %v210
    %228 = vst.msk [vmem:[%s5 + $0x24] sm:$0xf] %vm218, %v211
    %229 = vst.msk [vmem:[%s5 + $0x28] sm:$0xf] %vm218, %v212
    %230 = vst.msk [vmem:[%s5 + $0x2c] sm:$0xf] %vm218, %v213
    %231 = vst.msk [vmem:[%s5 + $0x30] sm:$0xf] %vm218, %v214
    %232 = vst.msk [vmem:[%s5 + $0x34] sm:$0xf] %vm218, %v215
    %233 = vst.msk [vmem:[%s5 + $0x38] sm:$0xf] %vm218, %v216
    %234 = vst.msk [vmem:[%s5 + $0x3c] sm:$0xf] %vm218, %v217
    %v235 = vld [vmem:[%s4] sm:$0xff]
    %v236 = vld [vmem:[%s4 + $0x8] sm:$0xff]
    %v237 = vld [vmem:[%s4 + $0x10] sm:$0xff]
    %v238 = vld [vmem:[%s4 + $0x18] sm:$0xff]
    %v239 = vld [vmem:[%s4 + $0x20] sm:$0xff]
    %v240 = vld [vmem:[%s4 + $0x28] sm:$0xff]
    %v241 = vld [vmem:[%s4 + $0x30] sm:$0xff]
    %v242 = vld [vmem:[%s4 + $0x38] sm:$0xff]
    %vm243 = vcmask 523264
    %v245 = vsel %vm243, %v163, 0
    %v248 = vsel %vm243, %v165, 0
    %v251 = vsel %vm243, %v168, 0
    %v254 = vsel %vm243, %v170, 0
    %v257 = vsel %vm243, %v173, 0
    %v260 = vsel %vm243, %v175, 0
    %v263 = vsel %vm243, %v178, 0
    %v266 = vsel %vm243, %v180, 0
    %v269 = vsel %vm243, %v183, 0
    %v272 = vsel %vm243, %v185, 0
    %v275 = vsel %vm243, %v188, 0
    %v278 = vsel %vm243, %v190, 0
    %v281 = vsel %vm243, %v193, 0
    %v284 = vsel %vm243, %v195, 0
    %v287 = vsel %vm243, %v198, 0
    %v290 = vsel %vm243, %v200, 0
    %292 = vmatpush.msra.mxu0 0.0
    %293 = vmatpush.msra.mxu0 0.0
    %294 = vmatpush.msra.mxu0 0.0
    %295 = vmatpush.msra.mxu0 0.0
    %296 = vmatpush.msra.mxu0 0.0
    %297 = vmatpush.msra.mxu0 0.0
    %298 = vmatpush.msra.mxu0 0.0
    %299 = vmatpush.msra.mxu0 0.0
    %300 = vmatpush.msra.mxu0 %v242
    %301 = vmatpush.msra.mxu0 %v241
    %302 = vmatpush.msra.mxu0 %v240
    %303 = vmatpush.msra.mxu0 %v239
    %304 = vmatpush.msra.mxu0 %v238
    %305 = vmatpush.msra.mxu0 %v237
    %306 = vmatpush.msra.mxu0 %v236
    %307 = vmatpush.msra.mxu0 %v235
    %308 = vmatmul.f32.gmra.mxu0 %v245
    %v309 = vpop.f32.mrf.mxu0
    %v310 = vadd.f32 0.0, %v309
    %311 = vmatmul.f32.gmra.mxu0 %v248
    %v312 = vpop.f32.mrf.mxu0
    %v313 = vadd.f32 0.0, %v312
    %314 = vmatmul.f32.gmra.mxu0 %v251
    %v315 = vpop.f32.mrf.mxu0
    %v316 = vadd.f32 0.0, %v315
    %317 = vmatmul.f32.gmra.mxu0 %v254
    %v318 = vpop.f32.mrf.mxu0
    %v319 = vadd.f32 0.0, %v318
    %320 = vmatmul.f32.gmra.mxu0 %v257
    %v321 = vpop.f32.mrf.mxu0
    %v322 = vadd.f32 0.0, %v321
    %323 = vmatmul.f32.gmra.mxu0 %v260
    %v324 = vpop.f32.mrf.mxu0
    %v325 = vadd.f32 0.0, %v324
    %326 = vmatmul.f32.gmra.mxu0 %v263
    %v327 = vpop.f32.mrf.mxu0
    %v328 = vadd.f32 0.0, %v327
    %329 = vmatmul.f32.gmra.mxu0 %v266
    %v330 = vpop.f32.mrf.mxu0
    %v331 = vadd.f32 0.0, %v330
    %332 = vmatmul.f32.gmra.mxu0 %v269
    %v333 = vpop.f32.mrf.mxu0
    %v334 = vadd.f32 0.0, %v333
    %335 = vmatmul.f32.gmra.mxu0 %v272
    %v336 = vpop.f32.mrf.mxu0
    %v337 = vadd.f32 0.0, %v336
    %338 = vmatmul.f32.gmra.mxu0 %v275
    %v339 = vpop.f32.mrf.mxu0
    %v340 = vadd.f32 0.0, %v339
    %341 = vmatmul.f32.gmra.mxu0 %v278
    %v342 = vpop.f32.mrf.mxu0
    %v343 = vadd.f32 0.0, %v342
    %344 = vmatmul.f32.gmra.mxu0 %v281
    %v345 = vpop.f32.mrf.mxu0
    %v346 = vadd.f32 0.0, %v345
    %347 = vmatmul.f32.gmra.mxu0 %v284
    %v348 = vpop.f32.mrf.mxu0
    %v349 = vadd.f32 0.0, %v348
    %350 = vmatmul.f32.gmra.mxu0 %v287
    %v351 = vpop.f32.mrf.mxu0
    %v352 = vadd.f32 0.0, %v351
    %353 = vmatmul.f32.gmra.mxu0 %v290
    %v354 = vpop.f32.mrf.mxu0
    %v355 = vadd.f32 0.0, %v354
    %356 = vdwg.mxu0
    %vm357 = vcmask 31744
    %358 = vst.msk [vmem:[%s7] sm:$0xff] %vm357, %v310
    %359 = vst.msk [vmem:[%s7 + $0x8] sm:$0xff] %vm357, %v313
    %360 = vst.msk [vmem:[%s7 + $0x10] sm:$0xff] %vm357, %v316
    %361 = vst.msk [vmem:[%s7 + $0x18] sm:$0xff] %vm357, %v319
    %362 = vst.msk [vmem:[%s7 + $0x20] sm:$0xff] %vm357, %v322
    %363 = vst.msk [vmem:[%s7 + $0x28] sm:$0xff] %vm357, %v325
    %364 = vst.msk [vmem:[%s7 + $0x30] sm:$0xff] %vm357, %v328
    %365 = vst.msk [vmem:[%s7 + $0x38] sm:$0xff] %vm357, %v331
    %366 = vst.msk [vmem:[%s7 + $0x40] sm:$0xff] %vm357, %v334
    %367 = vst.msk [vmem:[%s7 + $0x48] sm:$0xff] %vm357, %v337
    %368 = vst.msk [vmem:[%s7 + $0x50] sm:$0xff] %vm357, %v340
    %369 = vst.msk [vmem:[%s7 + $0x58] sm:$0xff] %vm357, %v343
    %370 = vst.msk [vmem:[%s7 + $0x60] sm:$0xff] %vm357, %v346
    %371 = vst.msk [vmem:[%s7 + $0x68] sm:$0xff] %vm357, %v349
    %372 = vst.msk [vmem:[%s7 + $0x70] sm:$0xff] %vm357, %v352
    %373 = vst.msk [vmem:[%s7 + $0x78] sm:$0xff] %vm357, %v355
    %v374 = vld [vmem:[%s3] sm:$0xf]
    %v376 = vsel %vm243, %v374, 0
    %378 = vmatpush.xpose.msra.mxu0 %v290
    %379 = vmatpush.xpose.msra.mxu0 %v287
    %380 = vmatpush.xpose.msra.mxu0 %v284
    %381 = vmatpush.xpose.msra.mxu0 %v281
    %382 = vmatpush.xpose.msra.mxu0 %v278
    %383 = vmatpush.xpose.msra.mxu0 %v275
    %384 = vmatpush.xpose.msra.mxu0 %v272
    %385 = vmatpush.xpose.msra.mxu0 %v269
    %386 = vmatpush.xpose.msra.mxu0 %v266
    %387 = vmatpush.xpose.msra.mxu0 %v263
    %388 = vmatpush.xpose.msra.mxu0 %v260
    %389 = vmatpush.xpose.msra.mxu0 %v257
    %390 = vmatpush.xpose.msra.mxu0 %v254
    %391 = vmatpush.xpose.msra.mxu0 %v251
    %392 = vmatpush.xpose.msra.mxu0 %v248
    %393 = vmatpush.xpose.msra.mxu0 %v245
    %394 = vmatmul.f32.gmra.mxu0 %v376
    %v395 = vpop.f32.mrf.mxu0
    %v396 = vadd.f32 0.0, %v395
    %397 = vdwg.mxu0
    %398 = vst [vmem:[#allocation2] sm:$0xf] %v396
    %v399 = vld [vmem:[%s2] sm:$0xf]
    %v400 = vld [vmem:[%s2 + $0x4] sm:$0xf]
    %v401 = vld [vmem:[%s2 + $0x8] sm:$0xf]
    %v402 = vld [vmem:[%s2 + $0xc] sm:$0xf]
    %v403 = vld [vmem:[%s2 + $0x10] sm:$0xf]
    %v404 = vld [vmem:[%s2 + $0x14] sm:$0xf]
    %v405 = vld [vmem:[%s2 + $0x18] sm:$0xf]
    %v406 = vld [vmem:[%s2 + $0x1c] sm:$0xf]
    %v407 = vld [vmem:[%s2 + $0x20] sm:$0xf]
    %v408 = vld [vmem:[%s2 + $0x24] sm:$0xf]
    %v409 = vld [vmem:[%s2 + $0x28] sm:$0xf]
    %v410 = vld [vmem:[%s2 + $0x2c] sm:$0xf]
    %v411 = vld [vmem:[%s2 + $0x30] sm:$0xf]
    %v412 = vld [vmem:[%s2 + $0x34] sm:$0xf]
    %v413 = vld [vmem:[%s2 + $0x38] sm:$0xf]
    %v414 = vld [vmem:[%s2 + $0x3c] sm:$0xf]
    %v431 = vunpack.c.l.b16 %v399
    %v432 = vunpack.c.l.b16 %v400
    %v433 = vunpack.c.l.b16 %v401
    %v434 = vunpack.c.l.b16 %v402
    %v435 = vunpack.c.l.b16 %v403
    %v436 = vunpack.c.l.b16 %v404
    %v437 = vunpack.c.l.b16 %v405
    %v438 = vunpack.c.l.b16 %v406
    %v439 = vunpack.c.l.b16 %v407
    %v440 = vunpack.c.l.b16 %v408
    %v441 = vunpack.c.l.b16 %v409
    %v442 = vunpack.c.l.b16 %v410
    %v443 = vunpack.c.l.b16 %v411
    %v444 = vunpack.c.l.b16 %v412
    %v445 = vunpack.c.l.b16 %v413
    %v446 = vunpack.c.l.b16 %v414
    %v447 = vpack.c.b16 %v432, %v431
    %v448 = vpack.c.b16 %v434, %v433
    %v449 = vpack.c.b16 %v436, %v435
    %v450 = vpack.c.b16 %v438, %v437
    %v451 = vpack.c.b16 %v440, %v439
    %v452 = vpack.c.b16 %v442, %v441
    %v453 = vpack.c.b16 %v444, %v443
    %v454 = vpack.c.b16 %v446, %v445
    %463 = vmatpush.bf16.msra.mxu0 %v454
    %464 = vmatpush.bf16.msra.mxu0 %v453
    %465 = vmatpush.bf16.msra.mxu0 %v452
    %466 = vmatpush.bf16.msra.mxu0 %v451
    %467 = vmatpush.bf16.msra.mxu0 %v450
    %468 = vmatpush.bf16.msra.mxu0 %v449
    %469 = vmatpush.bf16.msra.mxu0 %v448
    %470 = vmatpush.bf16.msra.mxu0 %v447
    %471 = vmatmul.bf16.gmra.mxu0 %v89
    %v472 = vpop.f32.mrf.mxu0
    %v473 = vadd.f32 0.0, %v472
    %v474 = vpop.f32.mrf.mxu0
    %v475 = vadd.f32 0.0, %v474
    %476 = vmatmul.bf16.gmra.mxu0 %v90
    %v477 = vpop.f32.mrf.mxu0
    %v478 = vadd.f32 0.0, %v477
    %v479 = vpop.f32.mrf.mxu0
    %v480 = vadd.f32 0.0, %v479
    %481 = vmatmul.bf16.gmra.mxu0 %v91
    %v482 = vpop.f32.mrf.mxu0
    %v483 = vadd.f32 0.0, %v482
    %v484 = vpop.f32.mrf.mxu0
    %v485 = vadd.f32 0.0, %v484
    %486 = vmatmul.bf16.gmra.mxu0 %v92
    %v487 = vpop.f32.mrf.mxu0
    %v488 = vadd.f32 0.0, %v487
    %v489 = vpop.f32.mrf.mxu0
    %v490 = vadd.f32 0.0, %v489
    %491 = vmatmul.bf16.gmra.mxu0 %v93
    %v492 = vpop.f32.mrf.mxu0
    %v493 = vadd.f32 0.0, %v492
    %v494 = vpop.f32.mrf.mxu0
    %v495 = vadd.f32 0.0, %v494
    %496 = vmatmul.bf16.gmra.mxu0 %v94
    %v497 = vpop.f32.mrf.mxu0
    %v498 = vadd.f32 0.0, %v497
    %v499 = vpop.f32.mrf.mxu0
    %v500 = vadd.f32 0.0, %v499
    %501 = vmatmul.bf16.gmra.mxu0 %v95
    %v502 = vpop.f32.mrf.mxu0
    %v503 = vadd.f32 0.0, %v502
    %v504 = vpop.f32.mrf.mxu0
    %v505 = vadd.f32 0.0, %v504
    %506 = vmatmul.bf16.gmra.mxu0 %v96
    %v507 = vpop.f32.mrf.mxu0
    %v508 = vadd.f32 0.0, %v507
    %v509 = vpop.f32.mrf.mxu0
    %v510 = vadd.f32 0.0, %v509
    %511 = vdwg.mxu0
    %512 = vst.msk [vmem:[%s8] sm:$0xff] %vm243, %v473
    %513 = vst.msk [vmem:[%s8 + $0x8] sm:$0xff] %vm243, %v475
    %514 = vst.msk [vmem:[%s8 + $0x10] sm:$0xff] %vm243, %v478
    %515 = vst.msk [vmem:[%s8 + $0x18] sm:$0xff] %vm243, %v480
    %516 = vst.msk [vmem:[%s8 + $0x20] sm:$0xff] %vm243, %v483
    %517 = vst.msk [vmem:[%s8 + $0x28] sm:$0xff] %vm243, %v485
    %518 = vst.msk [vmem:[%s8 + $0x30] sm:$0xff] %vm243, %v488
    %519 = vst.msk [vmem:[%s8 + $0x38] sm:$0xff] %vm243, %v490
    %520 = vst.msk [vmem:[%s8 + $0x40] sm:$0xff] %vm243, %v493
    %521 = vst.msk [vmem:[%s8 + $0x48] sm:$0xff] %vm243, %v495
    %522 = vst.msk [vmem:[%s8 + $0x50] sm:$0xff] %vm243, %v498
    %523 = vst.msk [vmem:[%s8 + $0x58] sm:$0xff] %vm243, %v500
    %524 = vst.msk [vmem:[%s8 + $0x60] sm:$0xff] %vm243, %v503
    %525 = vst.msk [vmem:[%s8 + $0x68] sm:$0xff] %vm243, %v505
    %526 = vst.msk [vmem:[%s8 + $0x70] sm:$0xff] %vm243, %v508
    %527 = vst.msk [vmem:[%s8 + $0x78] sm:$0xff] %vm243, %v510
    // Predicated region
    $region22: #{tpu_custom_call.1} parent=1 // pred_check
      _
    $region23: #{tpu_custom_call.1} parent=1 // pred_check_branch
      %529 = sbr.rel (0) target = $region25
    $region24: #{tpu_custom_call.1} parent=1 // pred_region
      _
    $region25: #{tpu_custom_call.1} parent=1 // pred_fallthru
      _
    // Predicated region
    $region26: #{tpu_custom_call.1} parent=1 // pred_check
      _
    $region27: #{tpu_custom_call.1} parent=1 // pred_check_branch
      %531 = sbr.rel (0) target = $region29
    $region28: #{tpu_custom_call.1} parent=1 // pred_region
      %533 = vsyncadd [#allocation3], 0
      %s535 = sshll.u32 [#allocation2], 4
      %s536 = int_to_ptr.vmem [resolvable:$true] %s535
      %s537 = sshll.u32 %s6, 4
      %s538 = int_to_ptr.hbm [resolvable:$true] %s537
      %540 = dma.vmem_to_hbm [thread:$0]  %s536, 64, %s538, [#allocation3]
    $region29: #{tpu_custom_call.1} parent=1 // pred_fallthru
      _
    // Predicated region
    $region30: #{tpu_custom_call.1} parent=1 // pred_check
      _
    $region31: #{tpu_custom_call.1} parent=1 // pred_check_branch
      %542 = sbr.rel (0) target = $region33
    $region32: #{tpu_custom_call.1} parent=1 // pred_region
      _
    $region33: #{tpu_custom_call.1} parent=1 // pred_fallthru
      _
    // Predicated region
    $region34: #{tpu_custom_call.1} parent=1 // pred_check
      _
    $region35: #{tpu_custom_call.1} parent=1 // pred_check_branch
      %544 = sbr.rel (0) target = $region37
    $region36: #{tpu_custom_call.1} parent=1 // pred_region
      _
    $region37: #{tpu_custom_call.1} parent=1 // pred_fallthru
      _
    // Predicated region
    $region38: #{tpu_custom_call.1} parent=1 // pred_check
      _
    $region39: #{tpu_custom_call.1} parent=1 // pred_check_branch
      %546 = sbr.rel (0) target = $region41
    $region40: #{tpu_custom_call.1} parent=1 // pred_region
      _
    $region41: #{tpu_custom_call.1} parent=1 // pred_fallthru
      _
    // Predicated region
    $region42: #{tpu_custom_call.1} parent=1 // pred_check
      _
    $region43: #{tpu_custom_call.1} parent=1 // pred_check_branch
      %548 = sbr.rel (0) target = $region45
    $region44: #{tpu_custom_call.1} parent=1 // pred_region
      %550 = dma.done [#allocation3], 64
    $region45: #{tpu_custom_call.1} parent=1 // pred_fallthru
      _
    // Predicated region
    $region46: #{tpu_custom_call.1} parent=1 // pred_check
      _
    $region47: #{tpu_custom_call.1} parent=1 // pred_check_branch
      %552 = sbr.rel (0) target = $region49
    $region48: #{tpu_custom_call.1} parent=1 // pred_region
      _
    $region49: #{tpu_custom_call.1} parent=1 // pred_fallthru
      _
    // Predicated region
    $region50: #{tpu_custom_call.1} parent=1 // pred_check
      _
    $region51: #{tpu_custom_call.1} parent=1 // pred_check_branch
      %554 = sbr.rel (0) target = $region53
    $region52: #{tpu_custom_call.1} parent=1 // pred_region
      _
    $region53: #{tpu_custom_call.1} parent=1 // pred_fallthru
      _
    %555 = vsyncpa [#allocation3], 1

</llo_original>
